<compile_context>
chip_gen: v6e
topology: v6e:2x2x1
jax: 0.10.0
libtpu: 0.0.40
codegen_flags: <defaults>
</compile_context>

<pallas_src>
import functools

import jax
import jax.numpy as jnp
from jax import lax
from jax.experimental import pallas as pl
from jax.experimental.pallas import tpu as pltpu


def _round_up(x, m):
    return ((x + m - 1) // m) * m


def _pick_batch_group(B, K):
    """Largest divisor of B whose packed class columns fit one 128-lane group."""
    best = 1
    for g in range(1, B + 1):
        if B % g == 0 and g * K <= 128:
            best = g
    return best


def _pick_h_chunk(H):
    """Largest divisor of H that is <= 8 (bounds the per-chunk matmul slab)."""
    for c in range(min(H, 8), 0, -1):
        if H % c == 0:
            return c
    return 1


def _post_model_kernel(x_ref, w1_ref, b1_ref, w2_ref, b2_ref, o_ref, *,
                       n_chunks, h_chunk, w_pad):
    # x_ref : [Bg*Cin, H*Wpad]  bf16  one batch group, spatial flattened h-major
    #                                 (every h-row is a contiguous, 128-aligned
    #                                 lane group -> aligned slices, no relayout)
    # w1_ref: [Bg*Chid, Bg*Cin] bf16  block-diagonal 1x1-conv weight (transposed)
    # b1_ref: [Bg*Chid, 1]      f32   conv bias, tiled per batch in the group
    # w2_ref: [Bg*Chid, Gcols]  bf16  block-diagonal classifier weight, pre-scaled
    #                                 by 1/H (mean fold), zero-padded to Gcols
    # b2_ref: [1, Gcols]        f32   classifier bias, tiled + zero-padded
    # o_ref : [Wpad, Gcols]     f32   packed logits for this batch group
    w1 = w1_ref[...]
    bg_chid = w1.shape[0]
    chunk_w = h_chunk * w_pad

    # Hoisted bias lane-broadcast (broadcast_in_dim is not CSE'd inside loops).
    b1b = jnp.broadcast_to(b1_ref[...], (bg_chid, chunk_w))

    acc = None  # vreg/SSA accumulator [Bg*Chid, Wpad] f32 -- no VMEM scratch RMW
    for c in range(n_chunks):
        # One MXU matmul per H-chunk covering h_chunk rows for every batch in
        # the group (contraction = Bg*Cin instead of Cin; wide lane-dense RHS).
        xc = x_ref[:, c * chunk_w:(c + 1) * chunk_w]               # [Bg*Cin, chunk_w]
        hid = jnp.dot(w1, xc, preferred_element_type=jnp.float32)  # [Bg*Chid, chunk_w]
        r = jnp.maximum(hid + b1b, 0.0)                            # bias + ReLU in f32
        # Sum the h_chunk lane-groups of width Wpad (128-aligned slices, VALU adds).
        part = r[:, 0:w_pad]
        for j in range(1, h_chunk):
            part = part + r[:, j * w_pad:(j + 1) * w_pad]
        acc = part if acc is None else acc + part                  # init from chunk 0

    # Classifier: contract Bg*Chid (dim 0 of both operands).  The mean over H is
    # folded into w2 (1/H); permute(1,0,2) is realized by the [Wpad, Gcols]
    # output layout + out_spec index_map (K on lanes -> lane-dense store).
    logits = lax.dot_general(
        acc.astype(jnp.bfloat16), w2_ref[...],
        dimension_numbers=(((0,), (0,)), ((), ())),
        preferred_element_type=jnp.float32)
    o_ref[...] = (logits + b2_ref[...]).astype(o_ref.dtype)


def post_model_forward(x_nchw, w1, b1, w2, b2, is_tran=True):
    """x_nchw: [B, Cin, H, W] float32. Returns [T=W, B, K] float32."""
    del is_tran  # passthrough flag of the original forward; no numerical effect
    B, Cin, H, W = x_nchw.shape
    Chid = w1.shape[1]
    K = w2.shape[1]

    Bg = _pick_batch_group(B, K)              # batches packed per 128-lane group
    ngroups = B // Bg
    Gcols = _round_up(Bg * K, 128)            # padded once per group, not per batch
    Wpad = _round_up(W, 128)                  # lane-dense W
    Hc = _pick_h_chunk(H)
    n_chunks = H // Hc

    # ---- input prep: pad W, flatten spatial h-major, pack batch groups ----
    xp = x_nchw.astype(jnp.float32)
    if Wpad != W:
        xp = jnp.pad(xp, ((0, 0), (0, 0), (0, 0), (0, Wpad - W)))
    # [B, Cin, H, Wpad] -> [ngroups, Bg*Cin, H*Wpad]; bf16 halves the HBM stream.
    x_rs = xp.reshape(ngroups, Bg * Cin, H * Wpad).astype(jnp.bfloat16)

    # ---- weight prep (tiny tensors, built once outside the kernel) ----
    eye = jnp.eye(Bg, dtype=jnp.float32)
    w1_big = jnp.kron(eye, jnp.asarray(w1, jnp.float32).T).astype(jnp.bfloat16)
    b1_big = jnp.tile(jnp.asarray(b1, jnp.float32), Bg).reshape(Bg * Chid, 1)
    w2_core = jnp.kron(eye, jnp.asarray(w2, jnp.float32) / float(H))   # mean fold
    w2_big = jnp.zeros((Bg * Chid, Gcols), jnp.float32).at[:, :Bg * K].set(w2_core)
    w2_big = w2_big.astype(jnp.bfloat16)
    b2_big = jnp.zeros((1, Gcols), jnp.float32).at[0, :Bg * K].set(
        jnp.tile(jnp.asarray(b2, jnp.float32), Bg))

    kernel = functools.partial(_post_model_kernel, n_chunks=n_chunks,
                               h_chunk=Hc, w_pad=Wpad)

    flops = 2 * B * Cin * Chid * H * Wpad + 2 * B * Chid * K * Wpad
    bytes_accessed = (x_rs.size * 2 + Wpad * ngroups * Gcols * 4
                      + w1_big.size * 2 + w2_big.size * 2
                      + b1_big.size * 4 + b2_big.size * 4)

    out2d = pl.pallas_call(
        kernel,
        out_shape=jax.ShapeDtypeStruct((Wpad, ngroups * Gcols), jnp.float32),
        grid_spec=pltpu.PrefetchScalarGridSpec(
            num_scalar_prefetch=0,
            grid=(ngroups,),
            in_specs=[
                # One batch group's whole (flattened) image per step.
                pl.BlockSpec((None, Bg * Cin, H * Wpad), lambda g: (g, 0, 0)),
                # Weights/biases: constant block index -> fetched once.
                pl.BlockSpec((Bg * Chid, Bg * Cin), lambda g: (0, 0)),
                pl.BlockSpec((Bg * Chid, 1), lambda g: (0, 0)),
                pl.BlockSpec((Bg * Chid, Gcols), lambda g: (0, 0)),
                pl.BlockSpec((1, Gcols), lambda g: (0, 0)),
            ],
            # [Wpad, ngroups*Gcols]: rows = W (the permute target), columns =
            # the 128-lane group holding this batch group's packed logits.
            out_specs=pl.BlockSpec((Wpad, Gcols), lambda g: (0, g)),
        ),
        compiler_params=pltpu.CompilerParams(
            dimension_semantics=("parallel",)),
        cost_estimate=pl.CostEstimate(
            flops=flops, transcendentals=0, bytes_accessed=bytes_accessed),
    )(x_rs, w1_big, b1_big, w2_big, b2_big)

    # [Wpad, ngroups*Gcols] -> [W, B, K]: trim W/lane padding, unpack the groups.
    out = out2d.reshape(Wpad, ngroups, Gcols)[:W, :, :Bg * K]
    return out.reshape(W, ngroups, Bg, K).reshape(W, B, K)


def reference_forward(x_nchw, w1, b1, w2, b2):
    """Pure-JAX f32 reference mirroring the synthetic torch model + Post_Model."""
    x = jnp.transpose(x_nchw, (0, 2, 3, 1)).astype(jnp.float32)    # NHWC
    h = jnp.maximum(jnp.einsum('bhwc,cd->bhwd', x, w1) + b1, 0.0)
    seq = jnp.mean(h, axis=1)                                       # [B, W, Chid]
    logits = jnp.einsum('bwc,ck->bwk', seq, w2) + b2                # [B, T, K]
    return jnp.transpose(logits, (1, 0, 2))                         # permute(1,0,2)


if __name__ == "__main__":
    # Small shapes consistent with the forward: NCHW image in, [T, B, K] out.
    B, Cin, H, W = 2, 4, 16, 16
    Chid, K = 32, 16

    key = jax.random.PRNGKey(0)
    kx, kw1, kb1, kw2, kb2 = jax.random.split(key, 5)

    x = jax.random.normal(kx, (B, Cin, H, W), dtype=jnp.float32)

    # Deterministic synthetic parameters (not loaded from a checkpoint).
    w1 = jax.random.normal(kw1, (Cin, Chid), dtype=jnp.float32) * 0.1
    b1 = jax.random.normal(kb1, (Chid,), dtype=jnp.float32) * 0.1
    w2 = jax.random.normal(kw2, (Chid, K), dtype=jnp.float32) * 0.1
    b2 = jax.random.normal(kb2, (K,), dtype=jnp.float32) * 0.1

    out = post_model_forward(x, w1, b1, w2, b2, is_tran=True)
    out = jax.block_until_ready(out)
    assert out.shape == (W, B, K), out.shape

    ref = jax.block_until_ready(reference_forward(x, w1, b1, w2, b2))
    # bf16 matmul operands (f32 accumulate) -> tolerance relaxed accordingly.
    max_err = float(jnp.max(jnp.abs(out - ref)))
    assert jnp.allclose(out, ref, atol=2e-2, rtol=2e-2), max_err

    print("KERNEL_OK")
</pallas_src>

<mosaic_0001>
module attributes {stable_mosaic.version = 11 : i64} {
  func.func @_post_model_kernel(%arg0: i32, %arg1: memref<1x8x2048xbf16, #tpu.memory_space<vmem>>, %arg2: memref<64x8xbf16, #tpu.memory_space<vmem>>, %arg3: memref<64x1xf32, #tpu.memory_space<vmem>>, %arg4: memref<64x128xbf16, #tpu.memory_space<vmem>>, %arg5: memref<1x128xf32, #tpu.memory_space<vmem>>, %arg6: memref<128x128xf32, #tpu.memory_space<vmem>>) attributes {dimension_semantics = [#tpu.dimension_semantics<parallel>], iteration_bounds = array<i64: 1>, scalar_prefetch = 0 : i64, scratch_operands = 0 : i64, tpu.core_type = #tpu.core_type<tc>, window_params = [{transform_indices = @transform_0, window_bounds = array<i64: 1, 8, 2048>}, {pipeline_mode = #tpu.pipeline_mode<synchronous>, transform_indices = @transform_1, window_bounds = array<i64: 64, 8>}, {pipeline_mode = #tpu.pipeline_mode<synchronous>, transform_indices = @transform_2, window_bounds = array<i64: 64, 1>}, {pipeline_mode = #tpu.pipeline_mode<synchronous>, transform_indices = @transform_3, window_bounds = array<i64: 64, 128>}, {pipeline_mode = #tpu.pipeline_mode<synchronous>, transform_indices = @transform_4, window_bounds = array<i64: 1, 128>}, {transform_indices = @transform_5, window_bounds = array<i64: 128, 128>}]} {
    %c0 = arith.constant 0 : index
    %c0_0 = arith.constant 0 : index
    %0 = vector.load %arg2[%c0, %c0_0] : memref<64x8xbf16, #tpu.memory_space<vmem>>, vector<64x8xbf16>
    %c0_1 = arith.constant 0 : index
    %c0_2 = arith.constant 0 : index
    %1 = vector.load %arg3[%c0_1, %c0_2] : memref<64x1xf32, #tpu.memory_space<vmem>>, vector<64x1xf32>
    %2 = vector.shape_cast %1 : vector<64x1xf32> to vector<64x1xf32>
    %3 = vector.broadcast %2 : vector<64x1xf32> to vector<64x1024xf32>
    %c0_3 = arith.constant 0 : index
    %c0_4 = arith.constant 0 : index
    %c0_5 = arith.constant 0 : index
    %4 = vector.load %arg1[%c0_3, %c0_4, %c0_5] : memref<1x8x2048xbf16, #tpu.memory_space<vmem>>, vector<1x8x1024xbf16>
    %5 = vector.shape_cast %4 : vector<1x8x1024xbf16> to vector<8x1024xbf16>
    %cst = arith.constant dense<0.000000e+00> : vector<64x1024xf32>
    %6 = tpu.matmul %0, %5, %cst {dimension_numbers = #tpu.dot_dimension_numbers<[1], [0], [0], [1], [0, 0, 1, 1], [], []>} : vector<64x8xbf16>, vector<8x1024xbf16>, vector<64x1024xf32> -> vector<64x1024xf32>
    %7 = arith.addf %6, %3 : vector<64x1024xf32>
    %cst_6 = arith.constant 0.000000e+00 : f32
    %8 = vector.broadcast %cst_6 : f32 to vector<64x1024xf32>
    %9 = arith.maximumf %7, %8 : vector<64x1024xf32>
    %10 = vector.extract_strided_slice %9 {offsets = [0, 0], sizes = [64, 128], strides = [1, 1]} : vector<64x1024xf32> to vector<64x128xf32>
    %11 = vector.extract_strided_slice %9 {offsets = [0, 128], sizes = [64, 128], strides = [1, 1]} : vector<64x1024xf32> to vector<64x128xf32>
    %12 = arith.addf %10, %11 : vector<64x128xf32>
    %13 = vector.extract_strided_slice %9 {offsets = [0, 256], sizes = [64, 128], strides = [1, 1]} : vector<64x1024xf32> to vector<64x128xf32>
    %14 = arith.addf %12, %13 : vector<64x128xf32>
    %15 = vector.extract_strided_slice %9 {offsets = [0, 384], sizes = [64, 128], strides = [1, 1]} : vector<64x1024xf32> to vector<64x128xf32>
    %16 = arith.addf %14, %15 : vector<64x128xf32>
    %17 = vector.extract_strided_slice %9 {offsets = [0, 512], sizes = [64, 128], strides = [1, 1]} : vector<64x1024xf32> to vector<64x128xf32>
    %18 = arith.addf %16, %17 : vector<64x128xf32>
    %19 = vector.extract_strided_slice %9 {offsets = [0, 640], sizes = [64, 128], strides = [1, 1]} : vector<64x1024xf32> to vector<64x128xf32>
    %20 = arith.addf %18, %19 : vector<64x128xf32>
    %21 = vector.extract_strided_slice %9 {offsets = [0, 768], sizes = [64, 128], strides = [1, 1]} : vector<64x1024xf32> to vector<64x128xf32>
    %22 = arith.addf %20, %21 : vector<64x128xf32>
    %23 = vector.extract_strided_slice %9 {offsets = [0, 896], sizes = [64, 128], strides = [1, 1]} : vector<64x1024xf32> to vector<64x128xf32>
    %24 = arith.addf %22, %23 : vector<64x128xf32>
    %c0_7 = arith.constant 0 : index
    %c0_8 = arith.constant 0 : index
    %c1024 = arith.constant 1024 : index
    %25 = vector.load %arg1[%c0_7, %c0_8, %c1024] : memref<1x8x2048xbf16, #tpu.memory_space<vmem>>, vector<1x8x1024xbf16>
    %26 = vector.shape_cast %25 : vector<1x8x1024xbf16> to vector<8x1024xbf16>
    %cst_9 = arith.constant dense<0.000000e+00> : vector<64x1024xf32>
    %27 = tpu.matmul %0, %26, %cst_9 {dimension_numbers = #tpu.dot_dimension_numbers<[1], [0], [0], [1], [0, 0, 1, 1], [], []>} : vector<64x8xbf16>, vector<8x1024xbf16>, vector<64x1024xf32> -> vector<64x1024xf32>
    %28 = arith.addf %27, %3 : vector<64x1024xf32>
    %cst_10 = arith.constant 0.000000e+00 : f32
    %29 = vector.broadcast %cst_10 : f32 to vector<64x1024xf32>
    %30 = arith.maximumf %28, %29 : vector<64x1024xf32>
    %31 = vector.extract_strided_slice %30 {offsets = [0, 0], sizes = [64, 128], strides = [1, 1]} : vector<64x1024xf32> to vector<64x128xf32>
    %32 = vector.extract_strided_slice %30 {offsets = [0, 128], sizes = [64, 128], strides = [1, 1]} : vector<64x1024xf32> to vector<64x128xf32>
    %33 = arith.addf %31, %32 : vector<64x128xf32>
    %34 = vector.extract_strided_slice %30 {offsets = [0, 256], sizes = [64, 128], strides = [1, 1]} : vector<64x1024xf32> to vector<64x128xf32>
    %35 = arith.addf %33, %34 : vector<64x128xf32>
    %36 = vector.extract_strided_slice %30 {offsets = [0, 384], sizes = [64, 128], strides = [1, 1]} : vector<64x1024xf32> to vector<64x128xf32>
    %37 = arith.addf %35, %36 : vector<64x128xf32>
    %38 = vector.extract_strided_slice %30 {offsets = [0, 512], sizes = [64, 128], strides = [1, 1]} : vector<64x1024xf32> to vector<64x128xf32>
    %39 = arith.addf %37, %38 : vector<64x128xf32>
    %40 = vector.extract_strided_slice %30 {offsets = [0, 640], sizes = [64, 128], strides = [1, 1]} : vector<64x1024xf32> to vector<64x128xf32>
    %41 = arith.addf %39, %40 : vector<64x128xf32>
    %42 = vector.extract_strided_slice %30 {offsets = [0, 768], sizes = [64, 128], strides = [1, 1]} : vector<64x1024xf32> to vector<64x128xf32>
    %43 = arith.addf %41, %42 : vector<64x128xf32>
    %44 = vector.extract_strided_slice %30 {offsets = [0, 896], sizes = [64, 128], strides = [1, 1]} : vector<64x1024xf32> to vector<64x128xf32>
    %45 = arith.addf %43, %44 : vector<64x128xf32>
    %46 = arith.addf %24, %45 : vector<64x128xf32>
    %47 = arith.truncf %46 : vector<64x128xf32> to vector<64x128xbf16>
    %c0_11 = arith.constant 0 : index
    %c0_12 = arith.constant 0 : index
    %48 = vector.load %arg4[%c0_11, %c0_12] : memref<64x128xbf16, #tpu.memory_space<vmem>>, vector<64x128xbf16>
    %cst_13 = arith.constant dense<0.000000e+00> : vector<128x128xf32>
    %49 = tpu.matmul %47, %48, %cst_13 {dimension_numbers = #tpu.dot_dimension_numbers<[0], [0], [1], [1], [0, 1, 1, 1], [], []>} : vector<64x128xbf16>, vector<64x128xbf16>, vector<128x128xf32> -> vector<128x128xf32>
    %c0_14 = arith.constant 0 : index
    %c0_15 = arith.constant 0 : index
    %50 = vector.load %arg5[%c0_14, %c0_15] : memref<1x128xf32, #tpu.memory_space<vmem>>, vector<1x128xf32>
    %51 = vector.broadcast %50 : vector<1x128xf32> to vector<128x128xf32>
    %52 = arith.addf %49, %51 : vector<128x128xf32>
    %c0_16 = arith.constant 0 : index
    %c0_17 = arith.constant 0 : index
    %53 = vector.load %arg6[%c0_16, %c0_17] : memref<128x128xf32, #tpu.memory_space<vmem>>, vector<128x128xf32>
    tpu.vector_store %arg6[%c0_16, %c0_17], %52 {strides = array<i32>} : memref<128x128xf32, #tpu.memory_space<vmem>>, vector<128x128xf32>,
    return
  }
  func.func @transform_0(%arg0: i32) -> (i32, i32, i32) {
    %c0_i32 = arith.constant 0 : i32
    %c0_i32_0 = arith.constant 0 : i32
    %c0_i32_1 = arith.constant 0 : i32
    return %arg0, %c0_i32, %c0_i32_0 : i32, i32, i32
  }
  func.func @transform_1(%arg0: i32) -> (i32, i32) {
    %c0_i32 = arith.constant 0 : i32
    %c0_i32_0 = arith.constant 0 : i32
    %c0_i32_1 = arith.constant 0 : i32
    return %c0_i32, %c0_i32_0 : i32, i32
  }
  func.func @transform_2(%arg0: i32) -> (i32, i32) {
    %c0_i32 = arith.constant 0 : i32
    %c0_i32_0 = arith.constant 0 : i32
    %c0_i32_1 = arith.constant 0 : i32
    return %c0_i32, %c0_i32_0 : i32, i32
  }
  func.func @transform_3(%arg0: i32) -> (i32, i32) {
    %c0_i32 = arith.constant 0 : i32
    %c0_i32_0 = arith.constant 0 : i32
    %c0_i32_1 = arith.constant 0 : i32
    return %c0_i32, %c0_i32_0 : i32, i32
  }
  func.func @transform_4(%arg0: i32) -> (i32, i32) {
    %c0_i32 = arith.constant 0 : i32
    %c0_i32_0 = arith.constant 0 : i32
    %c0_i32_1 = arith.constant 0 : i32
    return %c0_i32, %c0_i32_0 : i32, i32
  }
  func.func @transform_5(%arg0: i32) -> (i32, i32) {
    %c0_i32 = arith.constant 0 : i32
    %c0_i32_0 = arith.constant 0 : i32
    return %c0_i32, %arg0 : i32, i32
  }
}

</mosaic_0001>

<llo_original>
// kernel: tpu_custom_call.1
$region0: #{tpu_custom_call.1}
  #allocation0 [shape = 'u32[]', space=smem, size = 0x4, offset = 0x4, fixed_abs, tag = 'smem constant byte address 0x4 - core index']
  #allocation1 [shape = 'u32[144,128]{1,0:T(1,128)}', space=vmem, size = 0x12000, scoped, tag = 'internal scratch']
  %s0 = inlined_call_operand.vmem [shape: bf16[1,8,2048], index: 0, kind: input, shape index: {}]
  %s1 = inlined_call_operand.vmem [shape: bf16[64,8], index: 1, kind: input, shape index: {}]
  %s2 = inlined_call_operand.vmem [shape: f32[64,1], index: 2, kind: input, shape index: {}]
  %s3 = inlined_call_operand.vmem [shape: bf16[64,128], index: 3, kind: input, shape index: {}]
  %s4 = inlined_call_operand.vmem [shape: f32[1,128], index: 4, kind: input, shape index: {}]
  %s5 = inlined_call_operand.hbm [shape: f32[128,128], index: 5, kind: output, shape index: {}]
  %s6 = sld [smem:[#allocation0]]
  $region30: #{tpu_custom_call.1} parent=0
    _
  %s8 = ssub.s32 1, %s6
  %s9 = scalar_select 0, %s8, %s6
  $region1: #{tpu_custom_call.1} parent=0
    #allocation2 [shape = 'u8[65536]{0}', space=vmem, size = 0x10000, scoped, tag = 'output window, operand 0, single buffered']
    #allocation3 [shape = 's32[1]{0}', space=sflag, size = 0x4, scoped, tag = 'scoped memory for tpu_custom_call.1']
    %10 = vsyncpa [#allocation3], 0
    // Predicated region
    $region2: #{tpu_custom_call.1} parent=1 // pred_check
      _
    $region3: #{tpu_custom_call.1} parent=1 // pred_check_branch
      %12 = sbr.rel (0) target = $region5
    $region4: #{tpu_custom_call.1} parent=1 // pred_region
      _
    $region5: #{tpu_custom_call.1} parent=1 // pred_fallthru
      _
    // Predicated region
    $region6: #{tpu_custom_call.1} parent=1 // pred_check
      _
    $region7: #{tpu_custom_call.1} parent=1 // pred_check_branch
      %14 = sbr.rel (0) target = $region9
    $region8: #{tpu_custom_call.1} parent=1 // pred_region
      _
    $region9: #{tpu_custom_call.1} parent=1 // pred_fallthru
      _
    // Predicated region
    $region10: #{tpu_custom_call.1} parent=1 // pred_check
      _
    $region11: #{tpu_custom_call.1} parent=1 // pred_check_branch
      %16 = sbr.rel (0) target = $region13
    $region12: #{tpu_custom_call.1} parent=1 // pred_region
      _
    $region13: #{tpu_custom_call.1} parent=1 // pred_fallthru
      _
    // Predicated region
    $region14: #{tpu_custom_call.1} parent=1 // pred_check
      _
    $region15: #{tpu_custom_call.1} parent=1 // pred_check_branch
      %18 = sbr.rel (0) target = $region17
    $region16: #{tpu_custom_call.1} parent=1 // pred_region
      _
    $region17: #{tpu_custom_call.1} parent=1 // pred_fallthru
      _
    // Predicated region
    $region18: #{tpu_custom_call.1} parent=1 // pred_check
      _
    $region19: #{tpu_custom_call.1} parent=1 // pred_check_branch
      %20 = sbr.rel (0) target = $region21
    $region20: #{tpu_custom_call.1} parent=1 // pred_region
      _
    $region21: #{tpu_custom_call.1} parent=1 // pred_fallthru
      _
    %v22 = vld [vmem:[%s1] sm:$0xf]
    %v23 = vld [vmem:[%s1 + $0x4] sm:$0xf]
    %v24 = vld [vmem:[%s1 + $0x8] sm:$0xf]
    %v25 = vld [vmem:[%s1 + $0xc] sm:$0xf]
    %v26 = vld [vmem:[%s1 + $0x10] sm:$0xf]
    %v27 = vld [vmem:[%s1 + $0x14] sm:$0xf]
    %v28 = vld [vmem:[%s1 + $0x18] sm:$0xf]
    %v29 = vld [vmem:[%s1 + $0x1c] sm:$0xf]
    %v30 = vld [vmem:[%s2] sm:$0xff]
    %v31 = vld [vmem:[%s2 + $0x8] sm:$0xff]
    %v32 = vld [vmem:[%s2 + $0x10] sm:$0xff]
    %v33 = vld [vmem:[%s2 + $0x18] sm:$0xff]
    %v34 = vld [vmem:[%s2 + $0x20] sm:$0xff]
    %v35 = vld [vmem:[%s2 + $0x28] sm:$0xff]
    %v36 = vld [vmem:[%s2 + $0x30] sm:$0xff]
    %v37 = vld [vmem:[%s2 + $0x38] sm:$0xff]
    %39 = vset.pattern.permute.xlu0 0
    %40 = vperm.xlu0 %39, %v30
    %v41 = vpop.permute.xlu0 %40
    %44 = vset.pattern.permute.xlu0 0
    %45 = vperm.xlu0 %44, %v31
    %v46 = vpop.permute.xlu0 %45
    %49 = vset.pattern.permute.xlu0 0
    %50 = vperm.xlu0 %49, %v32
    %v51 = vpop.permute.xlu0 %50
    %54 = vset.pattern.permute.xlu0 0
    %55 = vperm.xlu0 %54, %v33
    %v56 = vpop.permute.xlu0 %55
    %59 = vset.pattern.permute.xlu0 0
    %60 = vperm.xlu0 %59, %v34
    %v61 = vpop.permute.xlu0 %60
    %64 = vset.pattern.permute.xlu0 0
    %65 = vperm.xlu0 %64, %v35
    %v66 = vpop.permute.xlu0 %65
    %69 = vset.pattern.permute.xlu0 0
    %70 = vperm.xlu0 %69, %v36
    %v71 = vpop.permute.xlu0 %70
    %74 = vset.pattern.permute.xlu0 0
    %75 = vperm.xlu0 %74, %v37
    %v76 = vpop.permute.xlu0 %75
    %v78 = vld [vmem:[%s0] sm:$0xff]
    %v79 = vld [vmem:[%s0 + $0x8] sm:$0xff]
    %v80 = vld [vmem:[%s0 + $0x10] sm:$0xff]
    %v81 = vld [vmem:[%s0 + $0x18] sm:$0xff]
    %v90 = vunpack.c.l.b16 %v22
    %v91 = vunpack.c.l.b16 %v23
    %v92 = vunpack.c.l.b16 %v24
    %v93 = vunpack.c.l.b16 %v25
    %v94 = vunpack.c.l.b16 %v26
    %v95 = vunpack.c.l.b16 %v27
    %v96 = vunpack.c.l.b16 %v28
    %v97 = vunpack.c.l.b16 %v29
    %v98 = vpack.c.b16 %v91, %v90
    %v99 = vpack.c.b16 %v93, %v92
    %v100 = vpack.c.b16 %v95, %v94
    %v101 = vpack.c.b16 %v97, %v96
    %v106 = vunpack.c.l.b16 %v78
    %v107 = vunpack.c.h.b16 %v78
    %v108 = vunpack.c.l.b16 %v79
    %v109 = vunpack.c.h.b16 %v79
    %v110 = vunpack.c.l.b16 %v80
    %v111 = vunpack.c.h.b16 %v80
    %v112 = vunpack.c.l.b16 %v81
    %v113 = vunpack.c.h.b16 %v81
    %v114 = vpack.c.b16 %v106, %v106
    %v115 = vpack.c.b16 %v107, %v107
    %v116 = vpack.c.b16 %v108, %v108
    %v117 = vpack.c.b16 %v109, %v109
    %v118 = vpack.c.b16 %v110, %v110
    %v119 = vpack.c.b16 %v111, %v111
    %v120 = vpack.c.b16 %v112, %v112
    %v121 = vpack.c.b16 %v113, %v113
    %vm122 = vcmask 64512
    %v124 = vsel %vm122, %v98, 0
    %v127 = vsel %vm122, %v99, 0
    %v130 = vsel %vm122, %v100, 0
    %v133 = vsel %vm122, %v101, 0
    %vm135 = vcmask 1043456
    %v137 = vsel %vm135, %v114, 0
    %v140 = vsel %vm135, %v115, 0
    %v143 = vsel %vm135, %v116, 0
    %v146 = vsel %vm135, %v117, 0
    %v149 = vsel %vm135, %v118, 0
    %v152 = vsel %vm135, %v119, 0
    %v155 = vsel %vm135, %v120, 0
    %v158 = vsel %vm135, %v121, 0
    %160 = vmatprep.subr.bf16.mxu0 0
    %161 = vmatpush1.bf16.msra.mxu0 0
    %162 = vmatprep.subr.bf16.mxu0 0
    %163 = vmatpush1.bf16.msra.mxu0 0
    %164 = vmatprep.subr.bf16.mxu0 0
    %165 = vmatpush1.bf16.msra.mxu0 0
    %166 = vmatprep.subr.bf16.mxu0 0
    %167 = vmatpush1.bf16.msra.mxu0 0
    %168 = vmatprep.subr.bf16.mxu0 0
    %169 = vmatpush1.bf16.msra.mxu0 0
    %170 = vmatprep.subr.bf16.mxu0 0
    %171 = vmatpush1.bf16.msra.mxu0 0
    %172 = vmatprep.subr.bf16.mxu0 0
    %173 = vmatpush1.bf16.msra.mxu0 0
    %174 = vmatprep.subr.bf16.mxu0 %v140
    %175 = vmatpush1.bf16.msra.mxu0 %v137
    %176 = vmatprep.subr.bf16.mxu0 0
    %177 = vmatpush2.bf16.msra.mxu0 0
    %178 = vmatprep.subr.bf16.mxu0 0
    %179 = vmatpush2.bf16.msra.mxu0 0
    %180 = vmatprep.subr.bf16.mxu0 0
    %181 = vmatpush2.bf16.msra.mxu0 0
    %182 = vmatprep.subr.bf16.mxu0 0
    %183 = vmatpush2.bf16.msra.mxu0 0
    %184 = vmatprep.subr.bf16.mxu0 0
    %185 = vmatpush2.bf16.msra.mxu0 0
    %186 = vmatprep.subr.bf16.mxu0 0
    %187 = vmatpush2.bf16.msra.mxu0 0
    %188 = vmatprep.subr.bf16.mxu0 0
    %189 = vmatpush2.bf16.msra.mxu0 0
    %190 = vmatprep.subr.bf16.mxu0 0
    %191 = vmatpush2.bf16.msra.mxu0 0
    %192 = vmatprep.mubr.bf16.mxu0 0
    %193 = vmatmul.mubr.bf16.gmra.mxu0 %v124
    %v194 = vpop.f32.mrf.mxu0
    %v195 = vadd.f32 %v41, %v194
    %v196 = vpop.f32.mrf.mxu0
    %v197 = vadd.f32 %v41, %v196
    %v198 = vpop.f32.mrf.mxu0
    %v199 = vadd.f32 %v46, %v198
    %v200 = vpop.f32.mrf.mxu0
    %v201 = vadd.f32 %v46, %v200
    %202 = vmatprep.mubr.bf16.mxu0 0
    %203 = vmatmul.mubr.bf16.gmra.mxu0 %v127
    %v204 = vpop.f32.mrf.mxu0
    %v205 = vadd.f32 %v51, %v204
    %v206 = vpop.f32.mrf.mxu0
    %v207 = vadd.f32 %v51, %v206
    %v208 = vpop.f32.mrf.mxu0
    %v209 = vadd.f32 %v56, %v208
    %v210 = vpop.f32.mrf.mxu0
    %v211 = vadd.f32 %v56, %v210
    %212 = vmatprep.mubr.bf16.mxu0 0
    %213 = vmatmul.mubr.bf16.gmra.mxu0 %v130
    %v214 = vpop.f32.mrf.mxu0
    %v215 = vadd.f32 %v61, %v214
    %v216 = vpop.f32.mrf.mxu0
    %v217 = vadd.f32 %v61, %v216
    %v218 = vpop.f32.mrf.mxu0
    %v219 = vadd.f32 %v66, %v218
    %v220 = vpop.f32.mrf.mxu0
    %v221 = vadd.f32 %v66, %v220
    %222 = vmatprep.mubr.bf16.mxu0 0
    %223 = vmatmul.mubr.bf16.gmra.mxu0 %v133
    %v224 = vpop.f32.mrf.mxu0
    %v225 = vadd.f32 %v71, %v224
    %v226 = vpop.f32.mrf.mxu0
    %v227 = vadd.f32 %v71, %v226
    %v228 = vpop.f32.mrf.mxu0
    %v229 = vadd.f32 %v76, %v228
    %v230 = vpop.f32.mrf.mxu0
    %v231 = vadd.f32 %v76, %v230
    %232 = vdwg.mxu0
    %233 = vmatprep.subr.bf16.mxu0 0
    %234 = vmatpush1.bf16.msra.mxu0 0
    %235 = vmatprep.subr.bf16.mxu0 0
    %236 = vmatpush1.bf16.msra.mxu0 0
    %237 = vmatprep.subr.bf16.mxu0 0
    %238 = vmatpush1.bf16.msra.mxu0 0
    %239 = vmatprep.subr.bf16.mxu0 0
    %240 = vmatpush1.bf16.msra.mxu0 0
    %241 = vmatprep.subr.bf16.mxu0 0
    %242 = vmatpush1.bf16.msra.mxu0 0
    %243 = vmatprep.subr.bf16.mxu0 0
    %244 = vmatpush1.bf16.msra.mxu0 0
    %245 = vmatprep.subr.bf16.mxu0 0
    %246 = vmatpush1.bf16.msra.mxu0 0
    %247 = vmatprep.subr.bf16.mxu0 %v146
    %248 = vmatpush1.bf16.msra.mxu0 %v143
    %249 = vmatprep.subr.bf16.mxu0 0
    %250 = vmatpush2.bf16.msra.mxu0 0
    %251 = vmatprep.subr.bf16.mxu0 0
    %252 = vmatpush2.bf16.msra.mxu0 0
    %253 = vmatprep.subr.bf16.mxu0 0
    %254 = vmatpush2.bf16.msra.mxu0 0
    %255 = vmatprep.subr.bf16.mxu0 0
    %256 = vmatpush2.bf16.msra.mxu0 0
    %257 = vmatprep.subr.bf16.mxu0 0
    %258 = vmatpush2.bf16.msra.mxu0 0
    %259 = vmatprep.subr.bf16.mxu0 0
    %260 = vmatpush2.bf16.msra.mxu0 0
    %261 = vmatprep.subr.bf16.mxu0 0
    %262 = vmatpush2.bf16.msra.mxu0 0
    %263 = vmatprep.subr.bf16.mxu0 0
    %264 = vmatpush2.bf16.msra.mxu0 0
    %265 = vmatprep.mubr.bf16.mxu0 0
    %266 = vmatmul.mubr.bf16.gmra.mxu0 %v124
    %v267 = vpop.f32.mrf.mxu0
    %v268 = vadd.f32 %v41, %v267
    %v269 = vpop.f32.mrf.mxu0
    %v270 = vadd.f32 %v41, %v269
    %v271 = vpop.f32.mrf.mxu0
    %v272 = vadd.f32 %v46, %v271
    %v273 = vpop.f32.mrf.mxu0
    %v274 = vadd.f32 %v46, %v273
    %275 = vmatprep.mubr.bf16.mxu0 0
    %276 = vmatmul.mubr.bf16.gmra.mxu0 %v127
    %v277 = vpop.f32.mrf.mxu0
    %v278 = vadd.f32 %v51, %v277
    %v279 = vpop.f32.mrf.mxu0
    %v280 = vadd.f32 %v51, %v279
    %v281 = vpop.f32.mrf.mxu0
    %v282 = vadd.f32 %v56, %v281
    %v283 = vpop.f32.mrf.mxu0
    %v284 = vadd.f32 %v56, %v283
    %285 = vmatprep.mubr.bf16.mxu0 0
    %286 = vmatmul.mubr.bf16.gmra.mxu0 %v130
    %v287 = vpop.f32.mrf.mxu0
    %v288 = vadd.f32 %v61, %v287
    %v289 = vpop.f32.mrf.mxu0
    %v290 = vadd.f32 %v61, %v289
    %v291 = vpop.f32.mrf.mxu0
    %v292 = vadd.f32 %v66, %v291
    %v293 = vpop.f32.mrf.mxu0
    %v294 = vadd.f32 %v66, %v293
    %295 = vmatprep.mubr.bf16.mxu0 0
    %296 = vmatmul.mubr.bf16.gmra.mxu0 %v133
    %v297 = vpop.f32.mrf.mxu0
    %v298 = vadd.f32 %v71, %v297
    %v299 = vpop.f32.mrf.mxu0
    %v300 = vadd.f32 %v71, %v299
    %v301 = vpop.f32.mrf.mxu0
    %v302 = vadd.f32 %v76, %v301
    %v303 = vpop.f32.mrf.mxu0
    %v304 = vadd.f32 %v76, %v303
    %305 = vdwg.mxu0
    %306 = vmatprep.subr.bf16.mxu0 0
    %307 = vmatpush1.bf16.msra.mxu0 0
    %308 = vmatprep.subr.bf16.mxu0 0
    %309 = vmatpush1.bf16.msra.mxu0 0
    %310 = vmatprep.subr.bf16.mxu0 0
    %311 = vmatpush1.bf16.msra.mxu0 0
    %312 = vmatprep.subr.bf16.mxu0 0
    %313 = vmatpush1.bf16.msra.mxu0 0
    %314 = vmatprep.subr.bf16.mxu0 0
    %315 = vmatpush1.bf16.msra.mxu0 0
    %316 = vmatprep.subr.bf16.mxu0 0
    %317 = vmatpush1.bf16.msra.mxu0 0
    %318 = vmatprep.subr.bf16.mxu0 0
    %319 = vmatpush1.bf16.msra.mxu0 0
    %320 = vmatprep.subr.bf16.mxu0 %v152
    %321 = vmatpush1.bf16.msra.mxu0 %v149
    %322 = vmatprep.subr.bf16.mxu0 0
    %323 = vmatpush2.bf16.msra.mxu0 0
    %324 = vmatprep.subr.bf16.mxu0 0
    %325 = vmatpush2.bf16.msra.mxu0 0
    %326 = vmatprep.subr.bf16.mxu0 0
    %327 = vmatpush2.bf16.msra.mxu0 0
    %328 = vmatprep.subr.bf16.mxu0 0
    %329 = vmatpush2.bf16.msra.mxu0 0
    %330 = vmatprep.subr.bf16.mxu0 0
    %331 = vmatpush2.bf16.msra.mxu0 0
    %332 = vmatprep.subr.bf16.mxu0 0
    %333 = vmatpush2.bf16.msra.mxu0 0
    %334 = vmatprep.subr.bf16.mxu0 0
    %335 = vmatpush2.bf16.msra.mxu0 0
    %336 = vmatprep.subr.bf16.mxu0 0
    %337 = vmatpush2.bf16.msra.mxu0 0
    %338 = vmatprep.mubr.bf16.mxu0 0
    %339 = vmatmul.mubr.bf16.gmra.mxu0 %v124
    %v340 = vpop.f32.mrf.mxu0
    %v341 = vadd.f32 %v41, %v340
    %v342 = vpop.f32.mrf.mxu0
    %v343 = vadd.f32 %v41, %v342
    %v344 = vpop.f32.mrf.mxu0
    %v345 = vadd.f32 %v46, %v344
    %v346 = vpop.f32.mrf.mxu0
    %v347 = vadd.f32 %v46, %v346
    %348 = vmatprep.mubr.bf16.mxu0 0
    %349 = vmatmul.mubr.bf16.gmra.mxu0 %v127
    %v350 = vpop.f32.mrf.mxu0
    %v351 = vadd.f32 %v51, %v350
    %v352 = vpop.f32.mrf.mxu0
    %v353 = vadd.f32 %v51, %v352
    %v354 = vpop.f32.mrf.mxu0
    %v355 = vadd.f32 %v56, %v354
    %v356 = vpop.f32.mrf.mxu0
    %v357 = vadd.f32 %v56, %v356
    %358 = vmatprep.mubr.bf16.mxu0 0
    %359 = vmatmul.mubr.bf16.gmra.mxu0 %v130
    %v360 = vpop.f32.mrf.mxu0
    %v361 = vadd.f32 %v61, %v360
    %v362 = vpop.f32.mrf.mxu0
    %v363 = vadd.f32 %v61, %v362
    %v364 = vpop.f32.mrf.mxu0
    %v365 = vadd.f32 %v66, %v364
    %v366 = vpop.f32.mrf.mxu0
    %v367 = vadd.f32 %v66, %v366
    %368 = vmatprep.mubr.bf16.mxu0 0
    %369 = vmatmul.mubr.bf16.gmra.mxu0 %v133
    %v370 = vpop.f32.mrf.mxu0
    %v371 = vadd.f32 %v71, %v370
    %v372 = vpop.f32.mrf.mxu0
    %v373 = vadd.f32 %v71, %v372
    %v374 = vpop.f32.mrf.mxu0
    %v375 = vadd.f32 %v76, %v374
    %v376 = vpop.f32.mrf.mxu0
    %v377 = vadd.f32 %v76, %v376
    %378 = vdwg.mxu0
    %379 = vmatprep.subr.bf16.mxu0 0
    %380 = vmatpush1.bf16.msra.mxu0 0
    %381 = vmatprep.subr.bf16.mxu0 0
    %382 = vmatpush1.bf16.msra.mxu0 0
    %383 = vmatprep.subr.bf16.mxu0 0
    %384 = vmatpush1.bf16.msra.mxu0 0
    %385 = vmatprep.subr.bf16.mxu0 0
    %386 = vmatpush1.bf16.msra.mxu0 0
    %387 = vmatprep.subr.bf16.mxu0 0
    %388 = vmatpush1.bf16.msra.mxu0 0
    %389 = vmatprep.subr.bf16.mxu0 0
    %390 = vmatpush1.bf16.msra.mxu0 0
    %391 = vmatprep.subr.bf16.mxu0 0
    %392 = vmatpush1.bf16.msra.mxu0 0
    %393 = vmatprep.subr.bf16.mxu0 %v158
    %394 = vmatpush1.bf16.msra.mxu0 %v155
    %395 = vmatprep.subr.bf16.mxu0 0
    %396 = vmatpush2.bf16.msra.mxu0 0
    %397 = vmatprep.subr.bf16.mxu0 0
    %398 = vmatpush2.bf16.msra.mxu0 0
    %399 = vmatprep.subr.bf16.mxu0 0
    %400 = vmatpush2.bf16.msra.mxu0 0
    %401 = vmatprep.subr.bf16.mxu0 0
    %402 = vmatpush2.bf16.msra.mxu0 0
    %403 = vmatprep.subr.bf16.mxu0 0
    %404 = vmatpush2.bf16.msra.mxu0 0
    %405 = vmatprep.subr.bf16.mxu0 0
    %406 = vmatpush2.bf16.msra.mxu0 0
    %407 = vmatprep.subr.bf16.mxu0 0
    %408 = vmatpush2.bf16.msra.mxu0 0
    %409 = vmatprep.subr.bf16.mxu0 0
    %410 = vmatpush2.bf16.msra.mxu0 0
    %411 = vmatprep.mubr.bf16.mxu0 0
    %412 = vmatmul.mubr.bf16.gmra.mxu0 %v124
    %v413 = vpop.f32.mrf.mxu0
    %v414 = vadd.f32 %v41, %v413
    %v415 = vpop.f32.mrf.mxu0
    %v416 = vadd.f32 %v41, %v415
    %v417 = vpop.f32.mrf.mxu0
    %v418 = vadd.f32 %v46, %v417
    %v419 = vpop.f32.mrf.mxu0
    %v420 = vadd.f32 %v46, %v419
    %421 = vmatprep.mubr.bf16.mxu0 0
    %422 = vmatmul.mubr.bf16.gmra.mxu0 %v127
    %v423 = vpop.f32.mrf.mxu0
    %v424 = vadd.f32 %v51, %v423
    %v425 = vpop.f32.mrf.mxu0
    %v426 = vadd.f32 %v51, %v425
    %v427 = vpop.f32.mrf.mxu0
    %v428 = vadd.f32 %v56, %v427
    %v429 = vpop.f32.mrf.mxu0
    %v430 = vadd.f32 %v56, %v429
    %431 = vmatprep.mubr.bf16.mxu0 0
    %432 = vmatmul.mubr.bf16.gmra.mxu0 %v130
    %v433 = vpop.f32.mrf.mxu0
    %v434 = vadd.f32 %v61, %v433
    %v435 = vpop.f32.mrf.mxu0
    %v436 = vadd.f32 %v61, %v435
    %v437 = vpop.f32.mrf.mxu0
    %v438 = vadd.f32 %v66, %v437
    %v439 = vpop.f32.mrf.mxu0
    %v440 = vadd.f32 %v66, %v439
    %441 = vmatprep.mubr.bf16.mxu0 0
    %442 = vmatmul.mubr.bf16.gmra.mxu0 %v133
    %v443 = vpop.f32.mrf.mxu0
    %v444 = vadd.f32 %v71, %v443
    %v445 = vpop.f32.mrf.mxu0
    %v446 = vadd.f32 %v71, %v445
    %v447 = vpop.f32.mrf.mxu0
    %v448 = vadd.f32 %v76, %v447
    %v449 = vpop.f32.mrf.mxu0
    %v450 = vadd.f32 %v76, %v449
    %451 = vdwg.mxu0
    %v452 = vmax.f32 %v195, 0.0
    %v453 = vmax.f32 %v197, 0.0
    %v454 = vmax.f32 %v268, 0.0
    %v455 = vmax.f32 %v270, 0.0
    %v456 = vmax.f32 %v341, 0.0
    %v457 = vmax.f32 %v343, 0.0
    %v458 = vmax.f32 %v414, 0.0
    %v459 = vmax.f32 %v416, 0.0
    %v460 = vmax.f32 %v199, 0.0
    %v461 = vmax.f32 %v201, 0.0
    %v462 = vmax.f32 %v272, 0.0
    %v463 = vmax.f32 %v274, 0.0
    %v464 = vmax.f32 %v345, 0.0
    %v465 = vmax.f32 %v347, 0.0
    %v466 = vmax.f32 %v418, 0.0
    %v467 = vmax.f32 %v420, 0.0
    %v468 = vmax.f32 %v205, 0.0
    %v469 = vmax.f32 %v207, 0.0
    %v470 = vmax.f32 %v278, 0.0
    %v471 = vmax.f32 %v280, 0.0
    %v472 = vmax.f32 %v351, 0.0
    %v473 = vmax.f32 %v353, 0.0
    %v474 = vmax.f32 %v424, 0.0
    %v475 = vmax.f32 %v426, 0.0
    %v476 = vmax.f32 %v209, 0.0
    %v477 = vmax.f32 %v211, 0.0
    %v478 = vmax.f32 %v282, 0.0
    %v479 = vmax.f32 %v284, 0.0
    %v480 = vmax.f32 %v355, 0.0
    %v481 = vmax.f32 %v357, 0.0
    %v482 = vmax.f32 %v428, 0.0
    %v483 = vmax.f32 %v430, 0.0
    %v484 = vmax.f32 %v215, 0.0
    %v485 = vmax.f32 %v217, 0.0
    %v486 = vmax.f32 %v288, 0.0
    %v487 = vmax.f32 %v290, 0.0
    %v488 = vmax.f32 %v361, 0.0
    %v489 = vmax.f32 %v363, 0.0
    %v490 = vmax.f32 %v434, 0.0
    %v491 = vmax.f32 %v436, 0.0
    %v492 = vmax.f32 %v219, 0.0
    %v493 = vmax.f32 %v221, 0.0
    %v494 = vmax.f32 %v292, 0.0
    %v495 = vmax.f32 %v294, 0.0
    %v496 = vmax.f32 %v365, 0.0
    %v497 = vmax.f32 %v367, 0.0
    %v498 = vmax.f32 %v438, 0.0
    %v499 = vmax.f32 %v440, 0.0
    %v500 = vmax.f32 %v225, 0.0
    %v501 = vmax.f32 %v227, 0.0
    %v502 = vmax.f32 %v298, 0.0
    %v503 = vmax.f32 %v300, 0.0
    %v504 = vmax.f32 %v371, 0.0
    %v505 = vmax.f32 %v373, 0.0
    %v506 = vmax.f32 %v444, 0.0
    %v507 = vmax.f32 %v446, 0.0
    %v508 = vmax.f32 %v229, 0.0
    %v509 = vmax.f32 %v231, 0.0
    %v510 = vmax.f32 %v302, 0.0
    %v511 = vmax.f32 %v304, 0.0
    %v512 = vmax.f32 %v375, 0.0
    %v513 = vmax.f32 %v377, 0.0
    %v514 = vmax.f32 %v448, 0.0
    %v515 = vmax.f32 %v450, 0.0
    %v516 = vadd.f32 %v452, %v453
    %v517 = vadd.f32 %v460, %v461
    %v518 = vadd.f32 %v468, %v469
    %v519 = vadd.f32 %v476, %v477
    %v520 = vadd.f32 %v484, %v485
    %v521 = vadd.f32 %v492, %v493
    %v522 = vadd.f32 %v500, %v501
    %v523 = vadd.f32 %v508, %v509
    %v524 = vadd.f32 %v516, %v454
    %v525 = vadd.f32 %v517, %v462
    %v526 = vadd.f32 %v518, %v470
    %v527 = vadd.f32 %v519, %v478
    %v528 = vadd.f32 %v520, %v486
    %v529 = vadd.f32 %v521, %v494
    %v530 = vadd.f32 %v522, %v502
    %v531 = vadd.f32 %v523, %v510
    %v532 = vadd.f32 %v524, %v455
    %v533 = vadd.f32 %v525, %v463
    %v534 = vadd.f32 %v526, %v471
    %v535 = vadd.f32 %v527, %v479
    %v536 = vadd.f32 %v528, %v487
    %v537 = vadd.f32 %v529, %v495
    %v538 = vadd.f32 %v530, %v503
    %v539 = vadd.f32 %v531, %v511
    %v540 = vadd.f32 %v532, %v456
    %v541 = vadd.f32 %v533, %v464
    %v542 = vadd.f32 %v534, %v472
    %v543 = vadd.f32 %v535, %v480
    %v544 = vadd.f32 %v536, %v488
    %v545 = vadd.f32 %v537, %v496
    %v546 = vadd.f32 %v538, %v504
    %v547 = vadd.f32 %v539, %v512
    %v548 = vadd.f32 %v540, %v457
    %v549 = vadd.f32 %v541, %v465
    %v550 = vadd.f32 %v542, %v473
    %v551 = vadd.f32 %v543, %v481
    %v552 = vadd.f32 %v544, %v489
    %v553 = vadd.f32 %v545, %v497
    %v554 = vadd.f32 %v546, %v505
    %v555 = vadd.f32 %v547, %v513
    %v556 = vadd.f32 %v548, %v458
    %v557 = vadd.f32 %v549, %v466
    %v558 = vadd.f32 %v550, %v474
    %v559 = vadd.f32 %v551, %v482
    %v560 = vadd.f32 %v552, %v490
    %v561 = vadd.f32 %v553, %v498
    %v562 = vadd.f32 %v554, %v506
    %v563 = vadd.f32 %v555, %v514
    %v564 = vadd.f32 %v556, %v459
    %v565 = vadd.f32 %v557, %v467
    %v566 = vadd.f32 %v558, %v475
    %v567 = vadd.f32 %v559, %v483
    %v568 = vadd.f32 %v560, %v491
    %v569 = vadd.f32 %v561, %v499
    %v570 = vadd.f32 %v562, %v507
    %v571 = vadd.f32 %v563, %v515
    %v572 = vld [vmem:[%s0 + $0x20] sm:$0xff]
    %v573 = vld [vmem:[%s0 + $0x28] sm:$0xff]
    %v574 = vld [vmem:[%s0 + $0x30] sm:$0xff]
    %v575 = vld [vmem:[%s0 + $0x38] sm:$0xff]
    %v580 = vunpack.c.l.b16 %v572
    %v581 = vunpack.c.h.b16 %v572
    %v582 = vunpack.c.l.b16 %v573
    %v583 = vunpack.c.h.b16 %v573
    %v584 = vunpack.c.l.b16 %v574
    %v585 = vunpack.c.h.b16 %v574
    %v586 = vunpack.c.l.b16 %v575
    %v587 = vunpack.c.h.b16 %v575
    %v588 = vpack.c.b16 %v580, %v580
    %v589 = vpack.c.b16 %v581, %v581
    %v590 = vpack.c.b16 %v582, %v582
    %v591 = vpack.c.b16 %v583, %v583
    %v592 = vpack.c.b16 %v584, %v584
    %v593 = vpack.c.b16 %v585, %v585
    %v594 = vpack.c.b16 %v586, %v586
    %v595 = vpack.c.b16 %v587, %v587
    %v597 = vsel %vm135, %v588, 0
    %v600 = vsel %vm135, %v589, 0
    %v603 = vsel %vm135, %v590, 0
    %v606 = vsel %vm135, %v591, 0
    %v609 = vsel %vm135, %v592, 0
    %v612 = vsel %vm135, %v593, 0
    %v615 = vsel %vm135, %v594, 0
    %v618 = vsel %vm135, %v595, 0
    %620 = vmatprep.subr.bf16.mxu0 0
    %621 = vmatpush1.bf16.msra.mxu0 0
    %622 = vmatprep.subr.bf16.mxu0 0
    %623 = vmatpush1.bf16.msra.mxu0 0
    %624 = vmatprep.subr.bf16.mxu0 0
    %625 = vmatpush1.bf16.msra.mxu0 0
    %626 = vmatprep.subr.bf16.mxu0 0
    %627 = vmatpush1.bf16.msra.mxu0 0
    %628 = vmatprep.subr.bf16.mxu0 0
    %629 = vmatpush1.bf16.msra.mxu0 0
    %630 = vmatprep.subr.bf16.mxu0 0
    %631 = vmatpush1.bf16.msra.mxu0 0
    %632 = vmatprep.subr.bf16.mxu0 0
    %633 = vmatpush1.bf16.msra.mxu0 0
    %634 = vmatprep.subr.bf16.mxu0 %v600
    %635 = vmatpush1.bf16.msra.mxu0 %v597
    %636 = vmatprep.subr.bf16.mxu0 0
    %637 = vmatpush2.bf16.msra.mxu0 0
    %638 = vmatprep.subr.bf16.mxu0 0
    %639 = vmatpush2.bf16.msra.mxu0 0
    %640 = vmatprep.subr.bf16.mxu0 0
    %641 = vmatpush2.bf16.msra.mxu0 0
    %642 = vmatprep.subr.bf16.mxu0 0
    %643 = vmatpush2.bf16.msra.mxu0 0
    %644 = vmatprep.subr.bf16.mxu0 0
    %645 = vmatpush2.bf16.msra.mxu0 0
    %646 = vmatprep.subr.bf16.mxu0 0
    %647 = vmatpush2.bf16.msra.mxu0 0
    %648 = vmatprep.subr.bf16.mxu0 0
    %649 = vmatpush2.bf16.msra.mxu0 0
    %650 = vmatprep.subr.bf16.mxu0 0
    %651 = vmatpush2.bf16.msra.mxu0 0
    %652 = vmatprep.mubr.bf16.mxu0 0
    %653 = vmatmul.mubr.bf16.gmra.mxu0 %v124
    %v654 = vpop.f32.mrf.mxu0
    %v655 = vadd.f32 %v41, %v654
    %v656 = vpop.f32.mrf.mxu0
    %v657 = vadd.f32 %v41, %v656
    %v658 = vpop.f32.mrf.mxu0
    %v659 = vadd.f32 %v46, %v658
    %v660 = vpop.f32.mrf.mxu0
    %v661 = vadd.f32 %v46, %v660
    %662 = vmatprep.mubr.bf16.mxu0 0
    %663 = vmatmul.mubr.bf16.gmra.mxu0 %v127
    %v664 = vpop.f32.mrf.mxu0
    %v665 = vadd.f32 %v51, %v664
    %v666 = vpop.f32.mrf.mxu0
    %v667 = vadd.f32 %v51, %v666
    %v668 = vpop.f32.mrf.mxu0
    %v669 = vadd.f32 %v56, %v668
    %v670 = vpop.f32.mrf.mxu0
    %v671 = vadd.f32 %v56, %v670
    %672 = vmatprep.mubr.bf16.mxu0 0
    %673 = vmatmul.mubr.bf16.gmra.mxu0 %v130
    %v674 = vpop.f32.mrf.mxu0
    %v675 = vadd.f32 %v61, %v674
    %v676 = vpop.f32.mrf.mxu0
    %v677 = vadd.f32 %v61, %v676
    %v678 = vpop.f32.mrf.mxu0
    %v679 = vadd.f32 %v66, %v678
    %v680 = vpop.f32.mrf.mxu0
    %v681 = vadd.f32 %v66, %v680
    %682 = vmatprep.mubr.bf16.mxu0 0
    %683 = vmatmul.mubr.bf16.gmra.mxu0 %v133
    %v684 = vpop.f32.mrf.mxu0
    %v685 = vadd.f32 %v71, %v684
    %v686 = vpop.f32.mrf.mxu0
    %v687 = vadd.f32 %v71, %v686
    %v688 = vpop.f32.mrf.mxu0
    %v689 = vadd.f32 %v76, %v688
    %v690 = vpop.f32.mrf.mxu0
    %v691 = vadd.f32 %v76, %v690
    %692 = vdwg.mxu0
    %693 = vmatprep.subr.bf16.mxu0 0
    %694 = vmatpush1.bf16.msra.mxu0 0
    %695 = vmatprep.subr.bf16.mxu0 0
    %696 = vmatpush1.bf16.msra.mxu0 0
    %697 = vmatprep.subr.bf16.mxu0 0
    %698 = vmatpush1.bf16.msra.mxu0 0
    %699 = vmatprep.subr.bf16.mxu0 0
    %700 = vmatpush1.bf16.msra.mxu0 0
    %701 = vmatprep.subr.bf16.mxu0 0
    %702 = vmatpush1.bf16.msra.mxu0 0
    %703 = vmatprep.subr.bf16.mxu0 0
    %704 = vmatpush1.bf16.msra.mxu0 0
    %705 = vmatprep.subr.bf16.mxu0 0
    %706 = vmatpush1.bf16.msra.mxu0 0
    %707 = vmatprep.subr.bf16.mxu0 %v606
    %708 = vmatpush1.bf16.msra.mxu0 %v603
    %709 = vmatprep.subr.bf16.mxu0 0
    %710 = vmatpush2.bf16.msra.mxu0 0
    %711 = vmatprep.subr.bf16.mxu0 0
    %712 = vmatpush2.bf16.msra.mxu0 0
    %713 = vmatprep.subr.bf16.mxu0 0
    %714 = vmatpush2.bf16.msra.mxu0 0
    %715 = vmatprep.subr.bf16.mxu0 0
    %716 = vmatpush2.bf16.msra.mxu0 0
    %717 = vmatprep.subr.bf16.mxu0 0
    %718 = vmatpush2.bf16.msra.mxu0 0
    %719 = vmatprep.subr.bf16.mxu0 0
    %720 = vmatpush2.bf16.msra.mxu0 0
    %721 = vmatprep.subr.bf16.mxu0 0
    %722 = vmatpush2.bf16.msra.mxu0 0
    %723 = vmatprep.subr.bf16.mxu0 0
    %724 = vmatpush2.bf16.msra.mxu0 0
    %725 = vmatprep.mubr.bf16.mxu0 0
    %726 = vmatmul.mubr.bf16.gmra.mxu0 %v124
    %v727 = vpop.f32.mrf.mxu0
    %v728 = vadd.f32 %v41, %v727
    %v729 = vpop.f32.mrf.mxu0
    %v730 = vadd.f32 %v41, %v729
    %v731 = vpop.f32.mrf.mxu0
    %v732 = vadd.f32 %v46, %v731
    %v733 = vpop.f32.mrf.mxu0
    %v734 = vadd.f32 %v46, %v733
    %735 = vmatprep.mubr.bf16.mxu0 0
    %736 = vmatmul.mubr.bf16.gmra.mxu0 %v127
    %v737 = vpop.f32.mrf.mxu0
    %v738 = vadd.f32 %v51, %v737
    %v739 = vpop.f32.mrf.mxu0
    %v740 = vadd.f32 %v51, %v739
    %v741 = vpop.f32.mrf.mxu0
    %v742 = vadd.f32 %v56, %v741
    %v743 = vpop.f32.mrf.mxu0
    %v744 = vadd.f32 %v56, %v743
    %745 = vmatprep.mubr.bf16.mxu0 0
    %746 = vmatmul.mubr.bf16.gmra.mxu0 %v130
    %v747 = vpop.f32.mrf.mxu0
    %v748 = vadd.f32 %v61, %v747
    %v749 = vpop.f32.mrf.mxu0
    %v750 = vadd.f32 %v61, %v749
    %v751 = vpop.f32.mrf.mxu0
    %v752 = vadd.f32 %v66, %v751
    %v753 = vpop.f32.mrf.mxu0
    %v754 = vadd.f32 %v66, %v753
    %755 = vmatprep.mubr.bf16.mxu0 0
    %756 = vmatmul.mubr.bf16.gmra.mxu0 %v133
    %v757 = vpop.f32.mrf.mxu0
    %v758 = vadd.f32 %v71, %v757
    %v759 = vpop.f32.mrf.mxu0
    %v760 = vadd.f32 %v71, %v759
    %v761 = vpop.f32.mrf.mxu0
    %v762 = vadd.f32 %v76, %v761
    %v763 = vpop.f32.mrf.mxu0
    %v764 = vadd.f32 %v76, %v763
    %765 = vdwg.mxu0
    %766 = vmatprep.subr.bf16.mxu0 0
    %767 = vmatpush1.bf16.msra.mxu0 0
    %768 = vmatprep.subr.bf16.mxu0 0
    %769 = vmatpush1.bf16.msra.mxu0 0
    %770 = vmatprep.subr.bf16.mxu0 0
    %771 = vmatpush1.bf16.msra.mxu0 0
    %772 = vmatprep.subr.bf16.mxu0 0
    %773 = vmatpush1.bf16.msra.mxu0 0
    %774 = vmatprep.subr.bf16.mxu0 0
    %775 = vmatpush1.bf16.msra.mxu0 0
    %776 = vmatprep.subr.bf16.mxu0 0
    %777 = vmatpush1.bf16.msra.mxu0 0
    %778 = vmatprep.subr.bf16.mxu0 0
    %779 = vmatpush1.bf16.msra.mxu0 0
    %780 = vmatprep.subr.bf16.mxu0 %v612
    %781 = vmatpush1.bf16.msra.mxu0 %v609
    %782 = vmatprep.subr.bf16.mxu0 0
    %783 = vmatpush2.bf16.msra.mxu0 0
    %784 = vmatprep.subr.bf16.mxu0 0
    %785 = vmatpush2.bf16.msra.mxu0 0
    %786 = vmatprep.subr.bf16.mxu0 0
    %787 = vmatpush2.bf16.msra.mxu0 0
    %788 = vmatprep.subr.bf16.mxu0 0
    %789 = vmatpush2.bf16.msra.mxu0 0
    %790 = vmatprep.subr.bf16.mxu0 0
    %791 = vmatpush2.bf16.msra.mxu0 0
    %792 = vmatprep.subr.bf16.mxu0 0
    %793 = vmatpush2.bf16.msra.mxu0 0
    %794 = vmatprep.subr.bf16.mxu0 0
    %795 = vmatpush2.bf16.msra.mxu0 0
    %796 = vmatprep.subr.bf16.mxu0 0
    %797 = vmatpush2.bf16.msra.mxu0 0
    %798 = vmatprep.mubr.bf16.mxu0 0
    %799 = vmatmul.mubr.bf16.gmra.mxu0 %v124
    %v800 = vpop.f32.mrf.mxu0
    %v801 = vadd.f32 %v41, %v800
    %v802 = vpop.f32.mrf.mxu0
    %v803 = vadd.f32 %v41, %v802
    %v804 = vpop.f32.mrf.mxu0
    %v805 = vadd.f32 %v46, %v804
    %v806 = vpop.f32.mrf.mxu0
    %v807 = vadd.f32 %v46, %v806
    %808 = vmatprep.mubr.bf16.mxu0 0
    %809 = vmatmul.mubr.bf16.gmra.mxu0 %v127
    %v810 = vpop.f32.mrf.mxu0
    %v811 = vadd.f32 %v51, %v810
    %v812 = vpop.f32.mrf.mxu0
    %v813 = vadd.f32 %v51, %v812
    %v814 = vpop.f32.mrf.mxu0
    %v815 = vadd.f32 %v56, %v814
    %v816 = vpop.f32.mrf.mxu0
    %v817 = vadd.f32 %v56, %v816
    %818 = vmatprep.mubr.bf16.mxu0 0
    %819 = vmatmul.mubr.bf16.gmra.mxu0 %v130
    %v820 = vpop.f32.mrf.mxu0
    %v821 = vadd.f32 %v61, %v820
    %v822 = vpop.f32.mrf.mxu0
    %v823 = vadd.f32 %v61, %v822
    %v824 = vpop.f32.mrf.mxu0
    %v825 = vadd.f32 %v66, %v824
    %v826 = vpop.f32.mrf.mxu0
    %v827 = vadd.f32 %v66, %v826
    %828 = vmatprep.mubr.bf16.mxu0 0
    %829 = vmatmul.mubr.bf16.gmra.mxu0 %v133
    %v830 = vpop.f32.mrf.mxu0
    %v831 = vadd.f32 %v71, %v830
    %v832 = vpop.f32.mrf.mxu0
    %v833 = vadd.f32 %v71, %v832
    %v834 = vpop.f32.mrf.mxu0
    %v835 = vadd.f32 %v76, %v834
    %v836 = vpop.f32.mrf.mxu0
    %v837 = vadd.f32 %v76, %v836
    %838 = vdwg.mxu0
    %839 = vmatprep.subr.bf16.mxu0 0
    %840 = vmatpush1.bf16.msra.mxu0 0
    %841 = vmatprep.subr.bf16.mxu0 0
    %842 = vmatpush1.bf16.msra.mxu0 0
    %843 = vmatprep.subr.bf16.mxu0 0
    %844 = vmatpush1.bf16.msra.mxu0 0
    %845 = vmatprep.subr.bf16.mxu0 0
    %846 = vmatpush1.bf16.msra.mxu0 0
    %847 = vmatprep.subr.bf16.mxu0 0
    %848 = vmatpush1.bf16.msra.mxu0 0
    %849 = vmatprep.subr.bf16.mxu0 0
    %850 = vmatpush1.bf16.msra.mxu0 0
    %851 = vmatprep.subr.bf16.mxu0 0
    %852 = vmatpush1.bf16.msra.mxu0 0
    %853 = vmatprep.subr.bf16.mxu0 %v618
    %854 = vmatpush1.bf16.msra.mxu0 %v615
    %855 = vmatprep.subr.bf16.mxu0 0
    %856 = vmatpush2.bf16.msra.mxu0 0
    %857 = vmatprep.subr.bf16.mxu0 0
    %858 = vmatpush2.bf16.msra.mxu0 0
    %859 = vmatprep.subr.bf16.mxu0 0
    %860 = vmatpush2.bf16.msra.mxu0 0
    %861 = vmatprep.subr.bf16.mxu0 0
    %862 = vmatpush2.bf16.msra.mxu0 0
    %863 = vmatprep.subr.bf16.mxu0 0
    %864 = vmatpush2.bf16.msra.mxu0 0
    %865 = vmatprep.subr.bf16.mxu0 0
    %866 = vmatpush2.bf16.msra.mxu0 0
    %867 = vmatprep.subr.bf16.mxu0 0
    %868 = vmatpush2.bf16.msra.mxu0 0
    %869 = vmatprep.subr.bf16.mxu0 0
    %870 = vmatpush2.bf16.msra.mxu0 0
    %871 = vmatprep.mubr.bf16.mxu0 0
    %872 = vmatmul.mubr.bf16.gmra.mxu0 %v124
    %v873 = vpop.f32.mrf.mxu0
    %v874 = vadd.f32 %v41, %v873
    %v875 = vpop.f32.mrf.mxu0
    %v876 = vadd.f32 %v41, %v875
    %v877 = vpop.f32.mrf.mxu0
    %v878 = vadd.f32 %v46, %v877
    %v879 = vpop.f32.mrf.mxu0
    %v880 = vadd.f32 %v46, %v879
    %881 = vmatprep.mubr.bf16.mxu0 0
    %882 = vmatmul.mubr.bf16.gmra.mxu0 %v127
    %v883 = vpop.f32.mrf.mxu0
    %v884 = vadd.f32 %v51, %v883
    %v885 = vpop.f32.mrf.mxu0
    %v886 = vadd.f32 %v51, %v885
    %v887 = vpop.f32.mrf.mxu0
    %v888 = vadd.f32 %v56, %v887
    %v889 = vpop.f32.mrf.mxu0
    %v890 = vadd.f32 %v56, %v889
    %891 = vmatprep.mubr.bf16.mxu0 0
    %892 = vmatmul.mubr.bf16.gmra.mxu0 %v130
    %v893 = vpop.f32.mrf.mxu0
    %v894 = vadd.f32 %v61, %v893
    %v895 = vpop.f32.mrf.mxu0
    %v896 = vadd.f32 %v61, %v895
    %v897 = vpop.f32.mrf.mxu0
    %v898 = vadd.f32 %v66, %v897
    %v899 = vpop.f32.mrf.mxu0
    %v900 = vadd.f32 %v66, %v899
    %901 = vmatprep.mubr.bf16.mxu0 0
    %902 = vmatmul.mubr.bf16.gmra.mxu0 %v133
    %v903 = vpop.f32.mrf.mxu0
    %v904 = vadd.f32 %v71, %v903
    %v905 = vpop.f32.mrf.mxu0
    %v906 = vadd.f32 %v71, %v905
    %v907 = vpop.f32.mrf.mxu0
    %v908 = vadd.f32 %v76, %v907
    %v909 = vpop.f32.mrf.mxu0
    %v910 = vadd.f32 %v76, %v909
    %911 = vdwg.mxu0
    %v912 = vmax.f32 %v655, 0.0
    %v913 = vmax.f32 %v657, 0.0
    %v914 = vmax.f32 %v728, 0.0
    %v915 = vmax.f32 %v730, 0.0
    %v916 = vmax.f32 %v801, 0.0
    %v917 = vmax.f32 %v803, 0.0
    %v918 = vmax.f32 %v874, 0.0
    %v919 = vmax.f32 %v876, 0.0
    %v920 = vmax.f32 %v659, 0.0
    %v921 = vmax.f32 %v661, 0.0
    %v922 = vmax.f32 %v732, 0.0
    %v923 = vmax.f32 %v734, 0.0
    %v924 = vmax.f32 %v805, 0.0
    %v925 = vmax.f32 %v807, 0.0
    %v926 = vmax.f32 %v878, 0.0
    %v927 = vmax.f32 %v880, 0.0
    %v928 = vmax.f32 %v665, 0.0
    %v929 = vmax.f32 %v667, 0.0
    %v930 = vmax.f32 %v738, 0.0
    %v931 = vmax.f32 %v740, 0.0
    %v932 = vmax.f32 %v811, 0.0
    %v933 = vmax.f32 %v813, 0.0
    %v934 = vmax.f32 %v884, 0.0
    %v935 = vmax.f32 %v886, 0.0
    %v936 = vmax.f32 %v669, 0.0
    %v937 = vmax.f32 %v671, 0.0
    %v938 = vmax.f32 %v742, 0.0
    %v939 = vmax.f32 %v744, 0.0
    %v940 = vmax.f32 %v815, 0.0
    %v941 = vmax.f32 %v817, 0.0
    %v942 = vmax.f32 %v888, 0.0
    %v943 = vmax.f32 %v890, 0.0
    %v944 = vmax.f32 %v675, 0.0
    %v945 = vmax.f32 %v677, 0.0
    %v946 = vmax.f32 %v748, 0.0
    %v947 = vmax.f32 %v750, 0.0
    %v948 = vmax.f32 %v821, 0.0
    %v949 = vmax.f32 %v823, 0.0
    %v950 = vmax.f32 %v894, 0.0
    %v951 = vmax.f32 %v896, 0.0
    %v952 = vmax.f32 %v679, 0.0
    %v953 = vmax.f32 %v681, 0.0
    %v954 = vmax.f32 %v752, 0.0
    %v955 = vmax.f32 %v754, 0.0
    %v956 = vmax.f32 %v825, 0.0
    %v957 = vmax.f32 %v827, 0.0
    %v958 = vmax.f32 %v898, 0.0
    %v959 = vmax.f32 %v900, 0.0
    %v960 = vmax.f32 %v685, 0.0
    %v961 = vmax.f32 %v687, 0.0
    %v962 = vmax.f32 %v758, 0.0
    %v963 = vmax.f32 %v760, 0.0
    %v964 = vmax.f32 %v831, 0.0
    %v965 = vmax.f32 %v833, 0.0
    %v966 = vmax.f32 %v904, 0.0
    %v967 = vmax.f32 %v906, 0.0
    %v968 = vmax.f32 %v689, 0.0
    %v969 = vmax.f32 %v691, 0.0
    %v970 = vmax.f32 %v762, 0.0
    %v971 = vmax.f32 %v764, 0.0
    %v972 = vmax.f32 %v835, 0.0
    %v973 = vmax.f32 %v837, 0.0
    %v974 = vmax.f32 %v908, 0.0
    %v975 = vmax.f32 %v910, 0.0
    %v976 = vadd.f32 %v912, %v913
    %v977 = vadd.f32 %v920, %v921
    %v978 = vadd.f32 %v928, %v929
    %v979 = vadd.f32 %v936, %v937
    %v980 = vadd.f32 %v944, %v945
    %v981 = vadd.f32 %v952, %v953
    %v982 = vadd.f32 %v960, %v961
    %v983 = vadd.f32 %v968, %v969
    %v984 = vadd.f32 %v976, %v914
    %v985 = vadd.f32 %v977, %v922
    %v986 = vadd.f32 %v978, %v930
    %v987 = vadd.f32 %v979, %v938
    %v988 = vadd.f32 %v980, %v946
    %v989 = vadd.f32 %v981, %v954
    %v990 = vadd.f32 %v982, %v962
    %v991 = vadd.f32 %v983, %v970
    %v992 = vadd.f32 %v984, %v915
    %v993 = vadd.f32 %v985, %v923
    %v994 = vadd.f32 %v986, %v931
    %v995 = vadd.f32 %v987, %v939
    %v996 = vadd.f32 %v988, %v947
    %v997 = vadd.f32 %v989, %v955
    %v998 = vadd.f32 %v990, %v963
    %v999 = vadd.f32 %v991, %v971
    %v1000 = vadd.f32 %v992, %v916
    %v1001 = vadd.f32 %v993, %v924
    %v1002 = vadd.f32 %v994, %v932
    %v1003 = vadd.f32 %v995, %v940
    %v1004 = vadd.f32 %v996, %v948
    %v1005 = vadd.f32 %v997, %v956
    %v1006 = vadd.f32 %v998, %v964
    %v1007 = vadd.f32 %v999, %v972
    %v1008 = vadd.f32 %v1000, %v917
    %v1009 = vadd.f32 %v1001, %v925
    %v1010 = vadd.f32 %v1002, %v933
    %v1011 = vadd.f32 %v1003, %v941
    %v1012 = vadd.f32 %v1004, %v949
    %v1013 = vadd.f32 %v1005, %v957
    %v1014 = vadd.f32 %v1006, %v965
    %v1015 = vadd.f32 %v1007, %v973
    %v1016 = vadd.f32 %v1008, %v918
    %v1017 = vadd.f32 %v1009, %v926
    %v1018 = vadd.f32 %v1010, %v934
    %v1019 = vadd.f32 %v1011, %v942
    %v1020 = vadd.f32 %v1012, %v950
    %v1021 = vadd.f32 %v1013, %v958
    %v1022 = vadd.f32 %v1014, %v966
    %v1023 = vadd.f32 %v1015, %v974
    %v1024 = vadd.f32 %v1016, %v919
    %v1025 = vadd.f32 %v1017, %v927
    %v1026 = vadd.f32 %v1018, %v935
    %v1027 = vadd.f32 %v1019, %v943
    %v1028 = vadd.f32 %v1020, %v951
    %v1029 = vadd.f32 %v1021, %v959
    %v1030 = vadd.f32 %v1022, %v967
    %v1031 = vadd.f32 %v1023, %v975
    %v1032 = vadd.f32 %v564, %v1024
    %v1033 = vadd.f32 %v565, %v1025
    %v1034 = vadd.f32 %v566, %v1026
    %v1035 = vadd.f32 %v567, %v1027
    %v1036 = vadd.f32 %v568, %v1028
    %v1037 = vadd.f32 %v569, %v1029
    %v1038 = vadd.f32 %v570, %v1030
    %v1039 = vadd.f32 %v571, %v1031
    %v1040 = vpack.c.bf16 %v1033, %v1032
    %v1041 = vpack.c.bf16 %v1035, %v1034
    %v1042 = vpack.c.bf16 %v1037, %v1036
    %v1043 = vpack.c.bf16 %v1039, %v1038
    %v1044 = vld [vmem:[%s3] sm:$0xf]
    %v1045 = vld [vmem:[%s3 + $0x4] sm:$0xf]
    %v1046 = vld [vmem:[%s3 + $0x8] sm:$0xf]
    %v1047 = vld [vmem:[%s3 + $0xc] sm:$0xf]
    %v1048 = vld [vmem:[%s3 + $0x10] sm:$0xf]
    %v1049 = vld [vmem:[%s3 + $0x14] sm:$0xf]
    %v1050 = vld [vmem:[%s3 + $0x18] sm:$0xf]
    %v1051 = vld [vmem:[%s3 + $0x1c] sm:$0xf]
    %v1052 = vld [vmem:[%s4] sm:$0x1]
    %v1054 = vlaneseq
    %v1055 = vshrl.u32 %v1054, 7
    %v1056 = vsub.s32 0, %v1055
    %v1057 = vrot.slane %v1052, %v1056
    %1059 = vxpose.xlu0.c.b16.start [1/8] %v1040, 128
    %1060 = vxpose.xlu0.c.b16.cont [2/8] %v1041, 128
    %1061 = vxpose.xlu0.c.b16.cont [3/8] %v1042, 128
    %1062 = vxpose.xlu0.c.b16.cont [4/8] %v1043, 128
    %1063 = vxpose.xlu0.c.b16.cont [5/8] 0, 128
    %1064 = vxpose.xlu0.c.b16.cont [6/8] 0, 128
    %1065 = vxpose.xlu0.c.b16.cont [7/8] 0, 128
    %1066 = vxpose.xlu0.c.b16.end [8/8] 0, 128
    %v1067 = vpop.trf.xlu0
    %v1068 = vpop.trf.xlu0
    %v1069 = vpop.trf.xlu0
    %v1070 = vpop.trf.xlu0
    %v1071 = vpop.trf.xlu0
    %v1072 = vpop.trf.xlu0
    %v1073 = vpop.trf.xlu0
    %v1074 = vpop.trf.xlu0
    %v1083 = vunpack.c.l.b16 %v1044
    %v1084 = vunpack.c.l.b16 %v1045
    %v1085 = vunpack.c.l.b16 %v1046
    %v1086 = vunpack.c.l.b16 %v1047
    %v1087 = vunpack.c.l.b16 %v1048
    %v1088 = vunpack.c.l.b16 %v1049
    %v1089 = vunpack.c.l.b16 %v1050
    %v1090 = vunpack.c.l.b16 %v1051
    %v1091 = vpack.c.b16 %v1084, %v1083
    %v1092 = vpack.c.b16 %v1086, %v1085
    %v1093 = vpack.c.b16 %v1088, %v1087
    %v1094 = vpack.c.b16 %v1090, %v1089
    %vm1099 = vcmask 523264
    %v1101 = vsel %vm1099, %v1067, 0
    %v1104 = vsel %vm1099, %v1068, 0
    %v1107 = vsel %vm1099, %v1069, 0
    %v1110 = vsel %vm1099, %v1070, 0
    %v1113 = vsel %vm1099, %v1071, 0
    %v1116 = vsel %vm1099, %v1072, 0
    %v1119 = vsel %vm1099, %v1073, 0
    %v1122 = vsel %vm1099, %v1074, 0
    %1124 = vmatprep.subr.bf16.mxu0 0
    %1125 = vmatpush1.bf16.msra.mxu0 0
    %1126 = vmatprep.subr.bf16.mxu0 0
    %1127 = vmatpush1.bf16.msra.mxu0 0
    %1128 = vmatprep.subr.bf16.mxu0 0
    %1129 = vmatpush1.bf16.msra.mxu0 0
    %1130 = vmatprep.subr.bf16.mxu0 0
    %1131 = vmatpush1.bf16.msra.mxu0 0
    %1132 = vmatprep.subr.bf16.mxu0 0
    %1133 = vmatpush1.bf16.msra.mxu0 %v1094
    %1134 = vmatprep.subr.bf16.mxu0 0
    %1135 = vmatpush1.bf16.msra.mxu0 %v1093
    %1136 = vmatprep.subr.bf16.mxu0 0
    %1137 = vmatpush1.bf16.msra.mxu0 %v1092
    %1138 = vmatprep.subr.bf16.mxu0 0
    %1139 = vmatpush1.bf16.msra.mxu0 %v1091
    %1140 = vmatprep.subr.bf16.mxu0 0
    %1141 = vmatpush2.bf16.msra.mxu0 0
    %1142 = vmatprep.subr.bf16.mxu0 0
    %1143 = vmatpush2.bf16.msra.mxu0 0
    %1144 = vmatprep.subr.bf16.mxu0 0
    %1145 = vmatpush2.bf16.msra.mxu0 0
    %1146 = vmatprep.subr.bf16.mxu0 0
    %1147 = vmatpush2.bf16.msra.mxu0 0
    %1148 = vmatprep.subr.bf16.mxu0 0
    %1149 = vmatpush2.bf16.msra.mxu0 0
    %1150 = vmatprep.subr.bf16.mxu0 0
    %1151 = vmatpush2.bf16.msra.mxu0 0
    %1152 = vmatprep.subr.bf16.mxu0 0
    %1153 = vmatpush2.bf16.msra.mxu0 0
    %1154 = vmatprep.subr.bf16.mxu0 0
    %1155 = vmatpush2.bf16.msra.mxu0 0
    %1156 = vmatprep.mubr.bf16.mxu0 0
    %1157 = vmatmul.mubr.bf16.gmra.mxu0 %v1101
    %v1158 = vpop.f32.mrf.mxu0
    %v1159 = vadd.f32 %v1057, %v1158
    %v1160 = vpop.f32.mrf.mxu0
    %v1161 = vpop.f32.mrf.mxu0
    %v1162 = vadd.f32 %v1057, %v1161
    %v1163 = vpop.f32.mrf.mxu0
    %1164 = vmatprep.mubr.bf16.mxu0 0
    %1165 = vmatmul.mubr.bf16.gmra.mxu0 %v1104
    %v1166 = vpop.f32.mrf.mxu0
    %v1167 = vadd.f32 %v1057, %v1166
    %v1168 = vpop.f32.mrf.mxu0
    %v1169 = vpop.f32.mrf.mxu0
    %v1170 = vadd.f32 %v1057, %v1169
    %v1171 = vpop.f32.mrf.mxu0
    %1172 = vmatprep.mubr.bf16.mxu0 0
    %1173 = vmatmul.mubr.bf16.gmra.mxu0 %v1107
    %v1174 = vpop.f32.mrf.mxu0
    %v1175 = vadd.f32 %v1057, %v1174
    %v1176 = vpop.f32.mrf.mxu0
    %v1177 = vpop.f32.mrf.mxu0
    %v1178 = vadd.f32 %v1057, %v1177
    %v1179 = vpop.f32.mrf.mxu0
    %1180 = vmatprep.mubr.bf16.mxu0 0
    %1181 = vmatmul.mubr.bf16.gmra.mxu0 %v1110
    %v1182 = vpop.f32.mrf.mxu0
    %v1183 = vadd.f32 %v1057, %v1182
    %v1184 = vpop.f32.mrf.mxu0
    %v1185 = vpop.f32.mrf.mxu0
    %v1186 = vadd.f32 %v1057, %v1185
    %v1187 = vpop.f32.mrf.mxu0
    %1188 = vmatprep.mubr.bf16.mxu0 0
    %1189 = vmatmul.mubr.bf16.gmra.mxu0 %v1113
    %v1190 = vpop.f32.mrf.mxu0
    %v1191 = vadd.f32 %v1057, %v1190
    %v1192 = vpop.f32.mrf.mxu0
    %v1193 = vpop.f32.mrf.mxu0
    %v1194 = vadd.f32 %v1057, %v1193
    %v1195 = vpop.f32.mrf.mxu0
    %1196 = vmatprep.mubr.bf16.mxu0 0
    %1197 = vmatmul.mubr.bf16.gmra.mxu0 %v1116
    %v1198 = vpop.f32.mrf.mxu0
    %v1199 = vadd.f32 %v1057, %v1198
    %v1200 = vpop.f32.mrf.mxu0
    %v1201 = vpop.f32.mrf.mxu0
    %v1202 = vadd.f32 %v1057, %v1201
    %v1203 = vpop.f32.mrf.mxu0
    %1204 = vmatprep.mubr.bf16.mxu0 0
    %1205 = vmatmul.mubr.bf16.gmra.mxu0 %v1119
    %v1206 = vpop.f32.mrf.mxu0
    %v1207 = vadd.f32 %v1057, %v1206
    %v1208 = vpop.f32.mrf.mxu0
    %v1209 = vpop.f32.mrf.mxu0
    %v1210 = vadd.f32 %v1057, %v1209
    %v1211 = vpop.f32.mrf.mxu0
    %1212 = vmatprep.mubr.bf16.mxu0 0
    %1213 = vmatmul.mubr.bf16.gmra.mxu0 %v1122
    %v1214 = vpop.f32.mrf.mxu0
    %v1215 = vadd.f32 %v1057, %v1214
    %v1216 = vpop.f32.mrf.mxu0
    %v1217 = vpop.f32.mrf.mxu0
    %v1218 = vadd.f32 %v1057, %v1217
    %v1219 = vpop.f32.mrf.mxu0
    %1220 = vdwg.mxu0
    %1221 = vst [vmem:[#allocation2] sm:$0xff] %v1159
    %1222 = vst [vmem:[#allocation2 + $0x8] sm:$0xff] %v1162
    %1223 = vst [vmem:[#allocation2 + $0x10] sm:$0xff] %v1167
    %1224 = vst [vmem:[#allocation2 + $0x18] sm:$0xff] %v1170
    %1225 = vst [vmem:[#allocation2 + $0x20] sm:$0xff] %v1175
    %1226 = vst [vmem:[#allocation2 + $0x28] sm:$0xff] %v1178
    %1227 = vst [vmem:[#allocation2 + $0x30] sm:$0xff] %v1183
    %1228 = vst [vmem:[#allocation2 + $0x38] sm:$0xff] %v1186
    %1229 = vst [vmem:[#allocation2 + $0x40] sm:$0xff] %v1191
    %1230 = vst [vmem:[#allocation2 + $0x48] sm:$0xff] %v1194
    %1231 = vst [vmem:[#allocation2 + $0x50] sm:$0xff] %v1199
    %1232 = vst [vmem:[#allocation2 + $0x58] sm:$0xff] %v1202
    %1233 = vst [vmem:[#allocation2 + $0x60] sm:$0xff] %v1207
    %1234 = vst [vmem:[#allocation2 + $0x68] sm:$0xff] %v1210
    %1235 = vst [vmem:[#allocation2 + $0x70] sm:$0xff] %v1215
    %1236 = vst [vmem:[#allocation2 + $0x78] sm:$0xff] %v1218
    // Predicated region
    $region22: #{tpu_custom_call.1} parent=1 // pred_check
      _
    $region23: #{tpu_custom_call.1} parent=1 // pred_check_branch
      %1238 = sbr.rel (0) target = $region25
    $region24: #{tpu_custom_call.1} parent=1 // pred_region
      %s1240 = ssub.s32 2048, 2048
      %1241 = vsyncadd [#allocation3], %s1240
      %s1242 = sshll.u32 [#allocation2], 4
      %s1243 = int_to_ptr.vmem [resolvable:$true] %s1242
      %1248 = dma.vmem_to_hbm [thread:$0]  %s1243, 2048, %s5, [#allocation3], 128, 128, 8
    $region25: #{tpu_custom_call.1} parent=1 // pred_fallthru
      _
    // Predicated region
    $region26: #{tpu_custom_call.1} parent=1 // pred_check
      _
    $region27: #{tpu_custom_call.1} parent=1 // pred_check_branch
      %1250 = sbr.rel (0) target = $region29
    $region28: #{tpu_custom_call.1} parent=1 // pred_region
      %1251 = dma.done [#allocation3], 2048
    $region29: #{tpu_custom_call.1} parent=1 // pred_fallthru
      _
    %1252 = vsyncpa [#allocation3], 1

</llo_original>
